<compile_context>
chip_gen: v7x
topology: tpu7x:2x2x1
jax: 0.10.0
libtpu: 0.0.40
codegen_flags: <defaults>
</compile_context>

<pallas_src>
import numpy as np
import jax
import jax.numpy as jnp
from jax import lax
from jax.experimental import pallas as pl
from jax.experimental.pallas import tpu as pltpu


def _interp_matrix(in_size, out_size):
    """(out, in) matrix reproducing F.interpolate(mode='bilinear', align_corners=False)."""
    scale = in_size / out_size
    src = (np.arange(out_size) + 0.5) * scale - 0.5
    src = np.maximum(src, 0.0)
    i0 = np.minimum(np.floor(src).astype(np.int64), in_size - 1)
    i1 = np.minimum(i0 + 1, in_size - 1)
    frac = src - i0
    B = np.zeros((out_size, in_size), dtype=np.float32)
    for o in range(out_size):
        B[o, int(i0[o])] += float(1.0 - frac[o])
        B[o, int(i1[o])] += float(frac[o])
    return B


def _full_spec(shape):
    nd = len(shape)
    return pl.BlockSpec(shape, lambda i, _nd=nd: (0,) * _nd)


def _make_kernel(N, Cout, S, lrelu, eps):
    M = N * S
    inv_m = 1.0 / M

    def kernel(patches_ref, up_ref, wde_ref, wproj_ref, pb_ref, gamma_ref, beta_ref, o_ref):
        # ---- deconv branch: one MXU dot, bf16 operands, f32 accumulate -------------
        # (deconv bias omitted: BatchNorm mean-subtraction makes it a mathematical no-op)
        y = jnp.dot(wde_ref[...], patches_ref[...],
                    preferred_element_type=jnp.float32)               # (Cout, M)

        # ---- identity branch: 1x1 projection of the bilinearly upsampled input -----
        ident = jnp.dot(wproj_ref[...], up_ref[...],
                        preferred_element_type=jnp.float32) + pb_ref[...]   # (Cout, M)

        # ---- BatchNorm2d: training-mode batch stats, two-pass (cancellation-safe) --
        mean = jnp.sum(y, axis=1, keepdims=True) * inv_m               # (Cout, 1)
        yc = y - mean
        var = jnp.sum(yc * yc, axis=1, keepdims=True) * inv_m
        y = yc * lax.rsqrt(var + eps)
        y = y * gamma_ref[...] + beta_ref[...]

        # ---- LeakyReLU(0.2) ---------------------------------------------------------
        y = jnp.where(y >= 0.0, y, lrelu * y)
        # TODO(synk): Dropout2d / injectNoise regularisers omitted -- module defaults
        # (dropout=None, noise=None) make regularise() an Identity.
        # TODO(synk): BatchNorm running_mean/running_var buffer updates are not emitted.

        # ---- residual add + NCHW-ordered store (lane-aligned slices: S % 128 == 0) --
        res = y + ident                                                # (Cout, N*S)
        for n in range(N):
            o_ref[n, :, :] = res[:, n * S:(n + 1) * S].astype(o_ref.dtype)

    return kernel


def build_residual_up_block(params, in_shape, kernel_size=(3, 3), lrelu=0.2, eps=1e-5):
    """One-time constant prep (hoisted out of the per-call path) + jitted forward."""
    N, Cin, H, W = in_shape
    KH, KW = kernel_size
    Cout = params["deconv_b"].shape[0]
    Ho, Wo = H + KH - 1, W + KW - 1          # stride=1, padding=0 (matches upsize())
    S = Ho * Wo
    M = N * S
    Kde = KH * KW * Cin

    # ---------- hoisted constant prep (runs once, not per forward call) -------------
    # ConvTranspose weight (Cin,Cout,KH,KW) -> spatially flipped -> (Cout, KH*KW*Cin)
    wd = jnp.asarray(params["deconv_w"], jnp.float32)[:, :, ::-1, ::-1]
    wde = jnp.transpose(wd, (2, 3, 0, 1)).reshape(Kde, Cout).T.astype(jnp.bfloat16)
    wproj = jnp.asarray(params["proj_w"], jnp.float32)[:, :, 0, 0].astype(jnp.bfloat16)
    pb = jnp.asarray(params["proj_b"], jnp.float32).reshape(Cout, 1)
    gamma = jnp.asarray(params["bn_gamma"], jnp.float32).reshape(Cout, 1)
    beta = jnp.asarray(params["bn_beta"], jnp.float32).reshape(Cout, 1)
    Bh = jnp.asarray(_interp_matrix(H, Ho))                       # (Ho, H)
    Bw = jnp.asarray(_interp_matrix(W, Wo))                       # (Wo, W)

    kernel = _make_kernel(N, Cout, S, lrelu, eps)

    call = pl.pallas_call(
        kernel,
        out_shape=jax.ShapeDtypeStruct((N, Cout, S), jnp.float32),
        grid=(1,),
        in_specs=[_full_spec((Kde, M)), _full_spec((Cin, M)),
                  _full_spec((Cout, Kde)), _full_spec((Cout, Cin)),
                  _full_spec((Cout, 1)), _full_spec((Cout, 1)), _full_spec((Cout, 1))],
        out_specs=_full_spec((N, Cout, S)),
        compiler_params=pltpu.CompilerParams(
            dimension_semantics=("arbitrary",),
            vmem_limit_bytes=32 * 1024 * 1024),
    )

    @jax.jit
    def forward(x):
        x = x.astype(jnp.float32)
        # im2col for ConvTranspose2d == VALID cross-correlation of the padded input
        # with the flipped kernel.  Transpose ONCE (channel-major) before the KH*KW
        # tap expansion so there is no 9x-expanded relayout transpose.
        xp = jnp.pad(x, ((0, 0), (0, 0), (KH - 1, KH - 1), (KW - 1, KW - 1)))
        xp = jnp.transpose(xp, (1, 0, 2, 3))                      # (Cin, N, Hp, Wp)
        taps = [xp[:, :, kh:kh + Ho, kw:kw + Wo]
                for kh in range(KH) for kw in range(KW)]          # each (Cin,N,Ho,Wo)
        patches = jnp.stack(taps, axis=0).reshape(Kde, M).astype(jnp.bfloat16)
        # TODO(synk): at production channel counts, move the tap accumulation into the
        # kernel (kh,kw grid axis + VMEM f32 accumulator) so `patches` never hits HBM,
        # and tile M with a two-pass BN so the M axis can be marked "parallel".

        # bilinear upsample (align_corners=False) via separable interpolation matrices
        up = jnp.einsum('oh,nchw,pw->cnop', Bh, x, Bw).reshape(Cin, M).astype(jnp.bfloat16)

        out = call(patches, up, wde, wproj, pb, gamma, beta)      # (N, Cout, Ho*Wo)
        return out.reshape(N, Cout, Ho, Wo)                       # contiguous: free

    return forward


if __name__ == "__main__":
    N, Cin, Cout = 2, 4, 8
    H = W = 14              # deconv/upsample output is 16x16 -> Ho*Wo = 256 lanes/batch
    KH = KW = 3

    key = jax.random.PRNGKey(0)
    k_x, k_dw, k_db, k_pw, k_pb = jax.random.split(key, 5)
    x = jax.random.normal(k_x, (N, Cin, H, W), jnp.float32)
    params = {
        # deterministic synthetic init (shapes match nn.ConvTranspose2d / nn.Conv2d / BN)
        "deconv_w": 0.1 * jax.random.normal(k_dw, (Cin, Cout, KH, KW), jnp.float32),
        "deconv_b": 0.1 * jax.random.normal(k_db, (Cout,), jnp.float32),
        "proj_w":   0.1 * jax.random.normal(k_pw, (Cout, Cin, 1, 1), jnp.float32),
        "proj_b":   0.1 * jax.random.normal(k_pb, (Cout,), jnp.float32),
        "bn_gamma": jnp.ones((Cout,), jnp.float32),
        "bn_beta":  jnp.zeros((Cout,), jnp.float32),
    }

    forward = build_residual_up_block(params, (N, Cin, H, W), kernel_size=(KH, KW))
    out = forward(x)
    jax.block_until_ready(out)
    assert out.shape == (N, Cout, H + KH - 1, W + KW - 1)
    assert bool(jnp.all(jnp.isfinite(out)))
    print("KERNEL_OK")
</pallas_src>

<mosaic_0001>
module attributes {stable_mosaic.version = 11 : i64} {
  func.func @kernel(%arg0: i32, %arg1: memref<36x512xbf16, #tpu.memory_space<vmem>>, %arg2: memref<4x512xbf16, #tpu.memory_space<vmem>>, %arg3: memref<8x36xbf16, #tpu.memory_space<vmem>>, %arg4: memref<8x4xbf16, #tpu.memory_space<vmem>>, %arg5: memref<8x1xf32, #tpu.memory_space<vmem>>, %arg6: memref<8x1xf32, #tpu.memory_space<vmem>>, %arg7: memref<8x1xf32, #tpu.memory_space<vmem>>, %arg8: memref<2x8x256xf32, #tpu.memory_space<vmem>>) attributes {dimension_semantics = [#tpu.dimension_semantics<arbitrary>], iteration_bounds = array<i64: 1>, scalar_prefetch = 0 : i64, scratch_operands = 0 : i64, tpu.core_type = #tpu.core_type<tc>, window_params = [{pipeline_mode = #tpu.pipeline_mode<synchronous>, transform_indices = @transform_0, window_bounds = array<i64: 36, 512>}, {pipeline_mode = #tpu.pipeline_mode<synchronous>, transform_indices = @transform_1, window_bounds = array<i64: 4, 512>}, {pipeline_mode = #tpu.pipeline_mode<synchronous>, transform_indices = @transform_2, window_bounds = array<i64: 8, 36>}, {pipeline_mode = #tpu.pipeline_mode<synchronous>, transform_indices = @transform_3, window_bounds = array<i64: 8, 4>}, {pipeline_mode = #tpu.pipeline_mode<synchronous>, transform_indices = @transform_4, window_bounds = array<i64: 8, 1>}, {pipeline_mode = #tpu.pipeline_mode<synchronous>, transform_indices = @transform_5, window_bounds = array<i64: 8, 1>}, {pipeline_mode = #tpu.pipeline_mode<synchronous>, transform_indices = @transform_6, window_bounds = array<i64: 8, 1>}, {pipeline_mode = #tpu.pipeline_mode<synchronous>, transform_indices = @transform_7, window_bounds = array<i64: 2, 8, 256>}]} {
    %c0 = arith.constant 0 : index
    %c0_0 = arith.constant 0 : index
    %0 = vector.load %arg3[%c0, %c0_0] : memref<8x36xbf16, #tpu.memory_space<vmem>>, vector<8x36xbf16>
    %c0_1 = arith.constant 0 : index
    %c0_2 = arith.constant 0 : index
    %1 = vector.load %arg1[%c0_1, %c0_2] : memref<36x512xbf16, #tpu.memory_space<vmem>>, vector<36x512xbf16>
    %cst = arith.constant dense<0.000000e+00> : vector<8x512xf32>
    %2 = tpu.matmul %0, %1, %cst {dimension_numbers = #tpu.dot_dimension_numbers<[1], [0], [0], [1], [0, 0, 1, 1], [], []>} : vector<8x36xbf16>, vector<36x512xbf16>, vector<8x512xf32> -> vector<8x512xf32>
    %c0_3 = arith.constant 0 : index
    %c0_4 = arith.constant 0 : index
    %3 = vector.load %arg4[%c0_3, %c0_4] : memref<8x4xbf16, #tpu.memory_space<vmem>>, vector<8x4xbf16>
    %c0_5 = arith.constant 0 : index
    %c0_6 = arith.constant 0 : index
    %4 = vector.load %arg2[%c0_5, %c0_6] : memref<4x512xbf16, #tpu.memory_space<vmem>>, vector<4x512xbf16>
    %cst_7 = arith.constant dense<0.000000e+00> : vector<8x512xf32>
    %5 = tpu.matmul %3, %4, %cst_7 {dimension_numbers = #tpu.dot_dimension_numbers<[1], [0], [0], [1], [0, 0, 1, 1], [], []>} : vector<8x4xbf16>, vector<4x512xbf16>, vector<8x512xf32> -> vector<8x512xf32>
    %c0_8 = arith.constant 0 : index
    %c0_9 = arith.constant 0 : index
    %6 = vector.load %arg5[%c0_8, %c0_9] : memref<8x1xf32, #tpu.memory_space<vmem>>, vector<8x1xf32>
    %7 = vector.broadcast %6 : vector<8x1xf32> to vector<8x512xf32>
    %8 = arith.addf %5, %7 : vector<8x512xf32>
    %cst_10 = arith.constant dense<0.000000e+00> : vector<8xf32>
    %9 = vector.multi_reduction <add>, %2, %cst_10 [1] : vector<8x512xf32> to vector<8xf32>
    %10 = vector.shape_cast %9 : vector<8xf32> to vector<8x1xf32>
    %cst_11 = arith.constant 0.001953125 : f32
    %11 = vector.broadcast %cst_11 : f32 to vector<8x1xf32>
    %12 = arith.mulf %10, %11 : vector<8x1xf32>
    %13 = vector.broadcast %12 : vector<8x1xf32> to vector<8x512xf32>
    %14 = arith.subf %2, %13 : vector<8x512xf32>
    %15 = arith.mulf %14, %14 : vector<8x512xf32>
    %cst_12 = arith.constant dense<0.000000e+00> : vector<8xf32>
    %16 = vector.multi_reduction <add>, %15, %cst_12 [1] : vector<8x512xf32> to vector<8xf32>
    %17 = vector.shape_cast %16 : vector<8xf32> to vector<8x1xf32>
    %cst_13 = arith.constant 0.001953125 : f32
    %18 = vector.broadcast %cst_13 : f32 to vector<8x1xf32>
    %19 = arith.mulf %17, %18 : vector<8x1xf32>
    %cst_14 = arith.constant 9.99999974E-6 : f32
    %20 = vector.broadcast %cst_14 : f32 to vector<8x1xf32>
    %21 = arith.addf %19, %20 : vector<8x1xf32>
    %22 = math.rsqrt %21 : vector<8x1xf32>
    %23 = vector.broadcast %22 : vector<8x1xf32> to vector<8x512xf32>
    %24 = arith.mulf %14, %23 : vector<8x512xf32>
    %c0_15 = arith.constant 0 : index
    %c0_16 = arith.constant 0 : index
    %25 = vector.load %arg6[%c0_15, %c0_16] : memref<8x1xf32, #tpu.memory_space<vmem>>, vector<8x1xf32>
    %26 = vector.broadcast %25 : vector<8x1xf32> to vector<8x512xf32>
    %27 = arith.mulf %24, %26 : vector<8x512xf32>
    %c0_17 = arith.constant 0 : index
    %c0_18 = arith.constant 0 : index
    %28 = vector.load %arg7[%c0_17, %c0_18] : memref<8x1xf32, #tpu.memory_space<vmem>>, vector<8x1xf32>
    %29 = vector.broadcast %28 : vector<8x1xf32> to vector<8x512xf32>
    %30 = arith.addf %27, %29 : vector<8x512xf32>
    %cst_19 = arith.constant 0.000000e+00 : f32
    %31 = vector.broadcast %cst_19 : f32 to vector<8x512xf32>
    %32 = arith.cmpf oge, %30, %31 : vector<8x512xf32>
    %cst_20 = arith.constant 2.000000e-01 : f32
    %33 = vector.broadcast %cst_20 : f32 to vector<8x512xf32>
    %34 = arith.mulf %33, %30 : vector<8x512xf32>
    %35 = arith.select %32, %30, %34 : vector<8x512xi1>, vector<8x512xf32>
    %36 = arith.addf %35, %8 : vector<8x512xf32>
    %37 = vector.extract_strided_slice %36 {offsets = [0, 0], sizes = [8, 256], strides = [1, 1]} : vector<8x512xf32> to vector<8x256xf32>
    %c0_21 = arith.constant 0 : index
    %c0_22 = arith.constant 0 : index
    %c0_23 = arith.constant 0 : index
    %38 = vector.load %arg8[%c0_21, %c0_22, %c0_23] : memref<2x8x256xf32, #tpu.memory_space<vmem>>, vector<1x8x256xf32>
    %39 = vector.shape_cast %38 : vector<1x8x256xf32> to vector<8x256xf32>
    %40 = vector.shape_cast %37 : vector<8x256xf32> to vector<1x8x256xf32>
    tpu.vector_store %arg8[%c0_21, %c0_22, %c0_23], %40 {strides = array<i32>} : memref<2x8x256xf32, #tpu.memory_space<vmem>>, vector<1x8x256xf32>,
    %41 = vector.extract_strided_slice %36 {offsets = [0, 256], sizes = [8, 256], strides = [1, 1]} : vector<8x512xf32> to vector<8x256xf32>
    %c1 = arith.constant 1 : index
    %c0_24 = arith.constant 0 : index
    %c0_25 = arith.constant 0 : index
    %42 = vector.load %arg8[%c1, %c0_24, %c0_25] : memref<2x8x256xf32, #tpu.memory_space<vmem>>, vector<1x8x256xf32>
    %43 = vector.shape_cast %42 : vector<1x8x256xf32> to vector<8x256xf32>
    %44 = vector.shape_cast %41 : vector<8x256xf32> to vector<1x8x256xf32>
    tpu.vector_store %arg8[%c1, %c0_24, %c0_25], %44 {strides = array<i32>} : memref<2x8x256xf32, #tpu.memory_space<vmem>>, vector<1x8x256xf32>,
    return
  }
  func.func @transform_0(%arg0: i32) -> (i32, i32) {
    %c0_i32 = arith.constant 0 : i32
    %c0_i32_0 = arith.constant 0 : i32
    %c0_i32_1 = arith.constant 0 : i32
    return %c0_i32, %c0_i32_0 : i32, i32
  }
  func.func @transform_1(%arg0: i32) -> (i32, i32) {
    %c0_i32 = arith.constant 0 : i32
    %c0_i32_0 = arith.constant 0 : i32
    %c0_i32_1 = arith.constant 0 : i32
    return %c0_i32, %c0_i32_0 : i32, i32
  }
  func.func @transform_2(%arg0: i32) -> (i32, i32) {
    %c0_i32 = arith.constant 0 : i32
    %c0_i32_0 = arith.constant 0 : i32
    %c0_i32_1 = arith.constant 0 : i32
    return %c0_i32, %c0_i32_0 : i32, i32
  }
  func.func @transform_3(%arg0: i32) -> (i32, i32) {
    %c0_i32 = arith.constant 0 : i32
    %c0_i32_0 = arith.constant 0 : i32
    %c0_i32_1 = arith.constant 0 : i32
    return %c0_i32, %c0_i32_0 : i32, i32
  }
  func.func @transform_4(%arg0: i32) -> (i32, i32) {
    %c0_i32 = arith.constant 0 : i32
    %c0_i32_0 = arith.constant 0 : i32
    %c0_i32_1 = arith.constant 0 : i32
    return %c0_i32, %c0_i32_0 : i32, i32
  }
  func.func @transform_5(%arg0: i32) -> (i32, i32) {
    %c0_i32 = arith.constant 0 : i32
    %c0_i32_0 = arith.constant 0 : i32
    %c0_i32_1 = arith.constant 0 : i32
    return %c0_i32, %c0_i32_0 : i32, i32
  }
  func.func @transform_6(%arg0: i32) -> (i32, i32) {
    %c0_i32 = arith.constant 0 : i32
    %c0_i32_0 = arith.constant 0 : i32
    %c0_i32_1 = arith.constant 0 : i32
    return %c0_i32, %c0_i32_0 : i32, i32
  }
  func.func @transform_7(%arg0: i32) -> (i32, i32, i32) {
    %c0_i32 = arith.constant 0 : i32
    %c0_i32_0 = arith.constant 0 : i32
    %c0_i32_1 = arith.constant 0 : i32
    %c0_i32_2 = arith.constant 0 : i32
    return %c0_i32, %c0_i32_0, %c0_i32_1 : i32, i32, i32
  }
}

</mosaic_0001>

<llo_original>
// kernel: forward.1
$region0: #{forward.1}
  #allocation0 [shape = 'u32[]', space=smem, size = 0x4, offset = 0x4, fixed_abs, tag = 'smem constant byte address 0x4 - core index']
  #allocation1 [shape = 'u32[144,128]{1,0:T(1,128)}', space=vmem, size = 0x12000, scoped, tag = 'internal scratch']
  %s0 = inlined_call_operand.vmem [shape: bf16[36,512], index: 0, kind: input, shape index: {}]
  %s1 = inlined_call_operand.vmem [shape: bf16[4,512], index: 1, kind: input, shape index: {}]
  %s2 = inlined_call_operand.vmem [shape: bf16[8,36], index: 2, kind: input, shape index: {}]
  %s3 = inlined_call_operand.vmem [shape: bf16[8,4], index: 3, kind: input, shape index: {}]
  %s4 = inlined_call_operand.vmem [shape: f32[8,1], index: 4, kind: input, shape index: {}]
  %s5 = inlined_call_operand.vmem [shape: f32[8,1], index: 5, kind: input, shape index: {}]
  %s6 = inlined_call_operand.vmem [shape: f32[8,1], index: 6, kind: input, shape index: {}]
  %s7 = inlined_call_operand.vmem [shape: f32[2,8,256], index: 7, kind: output, shape index: {}]
  %s8 = sld [smem:[#allocation0]]
  $region38: #{forward.1} parent=0
    _
  %s10 = ssub.s32 1, %s8
  %s11 = scalar_select 0, %s10, %s8
  // Predicated region
  $region2: #{forward.1} parent=0 // pred_check
    _
  $region3: #{forward.1} parent=0 // pred_check_branch
    %13 = sbr.rel (0) target = $region5
  $region4: #{forward.1} parent=0 // pred_region
    _
  $region5: #{forward.1} parent=0 // pred_fallthru
    _
  // Predicated region
  $region6: #{forward.1} parent=0 // pred_check
    _
  $region7: #{forward.1} parent=0 // pred_check_branch
    %15 = sbr.rel (0) target = $region9
  $region8: #{forward.1} parent=0 // pred_region
    _
  $region9: #{forward.1} parent=0 // pred_fallthru
    _
  // Predicated region
  $region10: #{forward.1} parent=0 // pred_check
    _
  $region11: #{forward.1} parent=0 // pred_check_branch
    %17 = sbr.rel (0) target = $region13
  $region12: #{forward.1} parent=0 // pred_region
    _
  $region13: #{forward.1} parent=0 // pred_fallthru
    _
  // Predicated region
  $region14: #{forward.1} parent=0 // pred_check
    _
  $region15: #{forward.1} parent=0 // pred_check_branch
    %19 = sbr.rel (0) target = $region17
  $region16: #{forward.1} parent=0 // pred_region
    _
  $region17: #{forward.1} parent=0 // pred_fallthru
    _
  // Predicated region
  $region18: #{forward.1} parent=0 // pred_check
    _
  $region19: #{forward.1} parent=0 // pred_check_branch
    %21 = sbr.rel (0) target = $region21
  $region20: #{forward.1} parent=0 // pred_region
    _
  $region21: #{forward.1} parent=0 // pred_fallthru
    _
  // Predicated region
  $region22: #{forward.1} parent=0 // pred_check
    _
  $region23: #{forward.1} parent=0 // pred_check_branch
    %23 = sbr.rel (0) target = $region25
  $region24: #{forward.1} parent=0 // pred_region
    _
  $region25: #{forward.1} parent=0 // pred_fallthru
    _
  // Predicated region
  $region26: #{forward.1} parent=0 // pred_check
    _
  $region27: #{forward.1} parent=0 // pred_check_branch
    %25 = sbr.rel (0) target = $region29
  $region28: #{forward.1} parent=0 // pred_region
    _
  $region29: #{forward.1} parent=0 // pred_fallthru
    _
  %v27 = vld [vmem:[%s2] sm:$0xf]
  %v28 = vld [vmem:[%s0] sm:$0xff]
  %v29 = vld [vmem:[%s0 + $0x8] sm:$0xff]
  %v30 = vld [vmem:[%s0 + $0x10] sm:$0xff]
  %v31 = vld [vmem:[%s0 + $0x18] sm:$0xff]
  %v32 = vld [vmem:[%s0 + $0x20] sm:$0xff]
  %v33 = vld [vmem:[%s0 + $0x28] sm:$0xff]
  %v34 = vld [vmem:[%s0 + $0x30] sm:$0xff]
  %v35 = vld [vmem:[%s0 + $0x38] sm:$0xff]
  %v36 = vld [vmem:[%s0 + $0x40] sm:$0x33]
  %v37 = vld [vmem:[%s0 + $0x48] sm:$0x33]
  %v48 = vunpack.c.l.b16 %v28
  %v49 = vunpack.c.h.b16 %v28
  %v50 = vunpack.c.l.b16 %v29
  %v51 = vunpack.c.h.b16 %v29
  %v52 = vunpack.c.l.b16 %v30
  %v53 = vunpack.c.h.b16 %v30
  %v54 = vunpack.c.l.b16 %v31
  %v55 = vunpack.c.h.b16 %v31
  %v56 = vunpack.c.l.b16 %v32
  %v57 = vunpack.c.h.b16 %v32
  %v58 = vunpack.c.l.b16 %v33
  %v59 = vunpack.c.h.b16 %v33
  %v60 = vunpack.c.l.b16 %v34
  %v61 = vunpack.c.h.b16 %v34
  %v62 = vunpack.c.l.b16 %v35
  %v63 = vunpack.c.h.b16 %v35
  %v64 = vunpack.c.l.b16 %v36
  %v65 = vunpack.c.h.b16 %v36
  %v66 = vunpack.c.l.b16 %v37
  %v67 = vunpack.c.h.b16 %v37
  %v68 = vpack.c.b16 %v52, %v48
  %v69 = vpack.c.b16 %v53, %v49
  %v70 = vpack.c.b16 %v54, %v50
  %v71 = vpack.c.b16 %v55, %v51
  %v72 = vpack.c.b16 %v60, %v56
  %v73 = vpack.c.b16 %v61, %v57
  %v74 = vpack.c.b16 %v62, %v58
  %v75 = vpack.c.b16 %v63, %v59
  %v76 = vpack.c.b16 %v64, %v64
  %v77 = vpack.c.b16 %v65, %v65
  %v78 = vpack.c.b16 %v66, %v66
  %v79 = vpack.c.b16 %v67, %v67
  %vm88 = vcmask 293888
  %v90 = vsel %vm88, %v27, 0
  %vm92 = vcmask 1041408
  %v94 = vsel %vm92, %v76, 0
  %v97 = vsel %vm92, %v77, 0
  %v100 = vsel %vm92, %v78, 0
  %v103 = vsel %vm92, %v79, 0
  %105 = vmatprep.subr.bf16.mxu0 %v69
  %106 = vmatpush1.bf16.msra.mxu0 %v68
  %107 = vmatprep.subr.bf16.mxu0 %v73
  %108 = vmatpush1.bf16.msra.mxu0 %v72
  %109 = vmatprep.subr.bf16.mxu0 %v97
  %110 = vmatpush1.bf16.msra.mxu0 %v94
  %111 = vmatprep.subr.bf16.mxu0 0
  %112 = vmatpush1.bf16.msra.mxu0 0
  %113 = vmatprep.subr.bf16.mxu0 0
  %114 = vmatpush1.bf16.msra.mxu0 0
  %115 = vmatprep.subr.bf16.mxu0 0
  %116 = vmatpush1.bf16.msra.mxu0 0
  %117 = vmatprep.subr.bf16.mxu0 0
  %118 = vmatpush1.bf16.msra.mxu0 0
  %119 = vmatprep.subr.bf16.mxu0 0
  %120 = vmatpush1.bf16.msra.mxu0 0
  %121 = vmatprep.subr.bf16.mxu0 0
  %122 = vmatpush1.bf16.msra.mxu0 0
  %123 = vmatprep.subr.bf16.mxu0 0
  %124 = vmatpush1.bf16.msra.mxu0 0
  %125 = vmatprep.subr.bf16.mxu0 0
  %126 = vmatpush1.bf16.msra.mxu0 0
  %127 = vmatprep.subr.bf16.mxu0 0
  %128 = vmatpush1.bf16.msra.mxu0 0
  %129 = vmatprep.subr.bf16.mxu0 0
  %130 = vmatpush1.bf16.msra.mxu0 0
  %131 = vmatprep.subr.bf16.mxu0 0
  %132 = vmatpush1.bf16.msra.mxu0 0
  %133 = vmatprep.subr.bf16.mxu0 0
  %134 = vmatpush1.bf16.msra.mxu0 0
  %135 = vmatprep.subr.bf16.mxu0 0
  %136 = vmatpush1.bf16.msra.mxu0 0
  %137 = vmatprep.mubr.bf16.mxu0 0
  %138 = vmatmul.mubr.bf16.gmra.mrb[0].mxu0 %v90
  %v139 = vpop.f32.mrb[0].mxu0
  %v140 = vadd.f32 0.0, %v139
  %v141 = vpop.f32.mrb[0].mxu0
  %v142 = vadd.f32 0.0, %v141
  %v143 = vpop.f32.mrb[0].mxu0
  %v144 = vpop.f32.mrb[0].mxu0
  %145 = vdwg.mxu0
  %146 = vmatprep.subr.bf16.mxu0 %v71
  %147 = vmatpush1.bf16.msra.mxu0 %v70
  %148 = vmatprep.subr.bf16.mxu0 %v75
  %149 = vmatpush1.bf16.msra.mxu0 %v74
  %150 = vmatprep.subr.bf16.mxu0 %v103
  %151 = vmatpush1.bf16.msra.mxu0 %v100
  %152 = vmatprep.subr.bf16.mxu0 0
  %153 = vmatpush1.bf16.msra.mxu0 0
  %154 = vmatprep.subr.bf16.mxu0 0
  %155 = vmatpush1.bf16.msra.mxu0 0
  %156 = vmatprep.subr.bf16.mxu0 0
  %157 = vmatpush1.bf16.msra.mxu0 0
  %158 = vmatprep.subr.bf16.mxu0 0
  %159 = vmatpush1.bf16.msra.mxu0 0
  %160 = vmatprep.subr.bf16.mxu0 0
  %161 = vmatpush1.bf16.msra.mxu0 0
  %162 = vmatprep.subr.bf16.mxu0 0
  %163 = vmatpush1.bf16.msra.mxu0 0
  %164 = vmatprep.subr.bf16.mxu0 0
  %165 = vmatpush1.bf16.msra.mxu0 0
  %166 = vmatprep.subr.bf16.mxu0 0
  %167 = vmatpush1.bf16.msra.mxu0 0
  %168 = vmatprep.subr.bf16.mxu0 0
  %169 = vmatpush1.bf16.msra.mxu0 0
  %170 = vmatprep.subr.bf16.mxu0 0
  %171 = vmatpush1.bf16.msra.mxu0 0
  %172 = vmatprep.subr.bf16.mxu0 0
  %173 = vmatpush1.bf16.msra.mxu0 0
  %174 = vmatprep.subr.bf16.mxu0 0
  %175 = vmatpush1.bf16.msra.mxu0 0
  %176 = vmatprep.subr.bf16.mxu0 0
  %177 = vmatpush1.bf16.msra.mxu0 0
  %178 = vmatprep.mubr.bf16.mxu0 0
  %179 = vmatmul.mubr.bf16.gmra.mrb[0].mxu0 %v90
  %v180 = vpop.f32.mrb[0].mxu0
  %v181 = vadd.f32 0.0, %v180
  %v182 = vpop.f32.mrb[0].mxu0
  %v183 = vadd.f32 0.0, %v182
  %v184 = vpop.f32.mrb[0].mxu0
  %v185 = vpop.f32.mrb[0].mxu0
  %186 = vdwg.mxu0
  %v187 = vld [vmem:[%s3] sm:$0xf]
  %v188 = vld [vmem:[%s1] sm:$0xff]
  %v189 = vld [vmem:[%s4] sm:$0xff]
  %191 = vset.pattern.permute.xlu0 0
  %192 = vperm.xlu0 %191, %v189
  %v193 = vpop.permute.xlu0 %192
  %v196 = vcombine.high %v188, %v188
  %v198 = vunpack.c.l.s4 1983009808
  %v199 = vunpack.c.0.s8 %v198
  %v200 = vlaneseq
  %v201 = vshrl.u32 %v200, 7
  %v202 = vsub.s32 %v199, %v201
  %v203 = vrot.slane %v188, %v202
  %v205 = vunpack.c.l.s4 1983009808
  %v206 = vunpack.c.0.s8 %v205
  %v207 = vlaneseq
  %v208 = vshrl.u32 %v207, 7
  %v209 = vsub.s32 %v206, %v208
  %v210 = vrot.slane %v196, %v209
  %v211 = vcombine.high %v203, %v203
  %v212 = vcombine.high %v210, %v210
  %vm213 = vcmask 31744
  %v215 = vsel %vm213, %v187, 0
  %v218 = vsel %vm92, %v203, 0
  %v221 = vsel %vm92, %v211, 0
  %v224 = vsel %vm92, %v210, 0
  %v227 = vsel %vm92, %v212, 0
  %229 = vmatprep.subr.bf16.mxu0 %v221
  %230 = vmatpush1.bf16.msra.mxu0 %v218
  %231 = vmatprep.subr.bf16.mxu0 0
  %232 = vmatpush1.bf16.msra.mxu0 0
  %233 = vmatprep.subr.bf16.mxu0 0
  %234 = vmatpush1.bf16.msra.mxu0 0
  %235 = vmatprep.subr.bf16.mxu0 0
  %236 = vmatpush1.bf16.msra.mxu0 0
  %237 = vmatprep.subr.bf16.mxu0 0
  %238 = vmatpush1.bf16.msra.mxu0 0
  %239 = vmatprep.subr.bf16.mxu0 0
  %240 = vmatpush1.bf16.msra.mxu0 0
  %241 = vmatprep.subr.bf16.mxu0 0
  %242 = vmatpush1.bf16.msra.mxu0 0
  %243 = vmatprep.subr.bf16.mxu0 0
  %244 = vmatpush1.bf16.msra.mxu0 0
  %245 = vmatprep.subr.bf16.mxu0 0
  %246 = vmatpush1.bf16.msra.mxu0 0
  %247 = vmatprep.subr.bf16.mxu0 0
  %248 = vmatpush1.bf16.msra.mxu0 0
  %249 = vmatprep.subr.bf16.mxu0 0
  %250 = vmatpush1.bf16.msra.mxu0 0
  %251 = vmatprep.subr.bf16.mxu0 0
  %252 = vmatpush1.bf16.msra.mxu0 0
  %253 = vmatprep.subr.bf16.mxu0 0
  %254 = vmatpush1.bf16.msra.mxu0 0
  %255 = vmatprep.subr.bf16.mxu0 0
  %256 = vmatpush1.bf16.msra.mxu0 0
  %257 = vmatprep.subr.bf16.mxu0 0
  %258 = vmatpush1.bf16.msra.mxu0 0
  %259 = vmatprep.subr.bf16.mxu0 0
  %260 = vmatpush1.bf16.msra.mxu0 0
  %261 = vmatprep.mubr.bf16.mxu0 0
  %262 = vmatmul.mubr.bf16.gmra.mrb[0].mxu0 %v215
  %v263 = vpop.f32.mrb[0].mxu0
  %v264 = vadd.f32 %v193, %v263
  %v265 = vpop.f32.mrb[0].mxu0
  %v266 = vadd.f32 %v193, %v265
  %v267 = vpop.f32.mrb[0].mxu0
  %v268 = vpop.f32.mrb[0].mxu0
  %269 = vdwg.mxu0
  %270 = vmatprep.subr.bf16.mxu0 %v227
  %271 = vmatpush1.bf16.msra.mxu0 %v224
  %272 = vmatprep.subr.bf16.mxu0 0
  %273 = vmatpush1.bf16.msra.mxu0 0
  %274 = vmatprep.subr.bf16.mxu0 0
  %275 = vmatpush1.bf16.msra.mxu0 0
  %276 = vmatprep.subr.bf16.mxu0 0
  %277 = vmatpush1.bf16.msra.mxu0 0
  %278 = vmatprep.subr.bf16.mxu0 0
  %279 = vmatpush1.bf16.msra.mxu0 0
  %280 = vmatprep.subr.bf16.mxu0 0
  %281 = vmatpush1.bf16.msra.mxu0 0
  %282 = vmatprep.subr.bf16.mxu0 0
  %283 = vmatpush1.bf16.msra.mxu0 0
  %284 = vmatprep.subr.bf16.mxu0 0
  %285 = vmatpush1.bf16.msra.mxu0 0
  %286 = vmatprep.subr.bf16.mxu0 0
  %287 = vmatpush1.bf16.msra.mxu0 0
  %288 = vmatprep.subr.bf16.mxu0 0
  %289 = vmatpush1.bf16.msra.mxu0 0
  %290 = vmatprep.subr.bf16.mxu0 0
  %291 = vmatpush1.bf16.msra.mxu0 0
  %292 = vmatprep.subr.bf16.mxu0 0
  %293 = vmatpush1.bf16.msra.mxu0 0
  %294 = vmatprep.subr.bf16.mxu0 0
  %295 = vmatpush1.bf16.msra.mxu0 0
  %296 = vmatprep.subr.bf16.mxu0 0
  %297 = vmatpush1.bf16.msra.mxu0 0
  %298 = vmatprep.subr.bf16.mxu0 0
  %299 = vmatpush1.bf16.msra.mxu0 0
  %300 = vmatprep.subr.bf16.mxu0 0
  %301 = vmatpush1.bf16.msra.mxu0 0
  %302 = vmatprep.mubr.bf16.mxu0 0
  %303 = vmatmul.mubr.bf16.gmra.mrb[0].mxu0 %v215
  %v304 = vpop.f32.mrb[0].mxu0
  %v305 = vadd.f32 %v193, %v304
  %v306 = vpop.f32.mrb[0].mxu0
  %v307 = vadd.f32 %v193, %v306
  %v308 = vpop.f32.mrb[0].mxu0
  %v309 = vpop.f32.mrb[0].mxu0
  %310 = vdwg.mxu0
  %v311 = vadd.f32 %v140, %v142
  %v312 = vadd.f32 %v311, %v181
  %v313 = vadd.f32 %v312, %v183
  %314 = vadd.xlane.f32.xlu0 %v313
  %v315 = vpop.xlane.xlu0 %314
  %v316 = vmul.f32 %v315, 0.001953125
  %v317 = vsub.f32 %v140, %v316
  %v318 = vsub.f32 %v142, %v316
  %v319 = vsub.f32 %v181, %v316
  %v320 = vsub.f32 %v183, %v316
  %v321 = vmul.f32 %v317, %v317
  %v322 = vmul.f32 %v318, %v318
  %v323 = vmul.f32 %v319, %v319
  %v324 = vmul.f32 %v320, %v320
  %v325 = vadd.f32 %v321, %v322
  %v326 = vadd.f32 %v325, %v323
  %v327 = vadd.f32 %v326, %v324
  %328 = vadd.xlane.f32.xlu0 %v327
  %v329 = vpop.xlane.xlu0 %328
  %v330 = vmul.f32 %v329, 0.001953125
  %v331 = vadd.f32 %v330, 1e-05
  %v332 = vrsqrt.pop %v331
  %v333 = vmul.f32 %v317, %v332
  %v334 = vmul.f32 %v318, %v332
  %v335 = vmul.f32 %v319, %v332
  %v336 = vmul.f32 %v320, %v332
  %v337 = vld [vmem:[%s5] sm:$0xff]
  %339 = vset.pattern.permute.xlu0 0
  %340 = vperm.xlu0 %339, %v337
  %v341 = vpop.permute.xlu0 %340
  %v343 = vmul.f32 %v333, %v341
  %v344 = vmul.f32 %v334, %v341
  %v345 = vmul.f32 %v335, %v341
  %v346 = vmul.f32 %v336, %v341
  %v347 = vld [vmem:[%s6] sm:$0xff]
  %349 = vset.pattern.permute.xlu0 0
  %350 = vperm.xlu0 %349, %v347
  %v351 = vpop.permute.xlu0 %350
  %v353 = vadd.f32 %v343, %v351
  %v354 = vadd.f32 %v344, %v351
  %v355 = vadd.f32 %v345, %v351
  %v356 = vadd.f32 %v346, %v351
  %vm357 = vcmp.ge.f32.partialorder %v353, 0.0
  %vm358 = vcmp.ge.f32.partialorder %v354, 0.0
  %vm359 = vcmp.ge.f32.partialorder %v355, 0.0
  %vm360 = vcmp.ge.f32.partialorder %v356, 0.0
  %v361 = vmul.f32 %v353, 0.2
  %v362 = vmul.f32 %v354, 0.2
  %v363 = vmul.f32 %v355, 0.2
  %v364 = vmul.f32 %v356, 0.2
  %v365 = vsel %vm357, %v353, %v361
  %v366 = vsel %vm358, %v354, %v362
  %v367 = vsel %vm359, %v355, %v363
  %v368 = vsel %vm360, %v356, %v364
  %v369 = vadd.f32 %v365, %v264
  %v370 = vadd.f32 %v366, %v266
  %v371 = vadd.f32 %v367, %v305
  %v372 = vadd.f32 %v368, %v307
  %373 = vst [vmem:[%s7] sm:$0xff] %v369
  %374 = vst [vmem:[%s7 + $0x8] sm:$0xff] %v370
  %s375 = scalar_lea.vmem %s7, 16
  %376 = vst [vmem:[%s375] sm:$0xff] %v371
  %377 = vst [vmem:[%s375 + $0x8] sm:$0xff] %v372
  // Predicated region
  $region30: #{forward.1} parent=0 // pred_check
    _
  $region31: #{forward.1} parent=0 // pred_check_branch
    %379 = sbr.rel (0) target = $region33
  $region32: #{forward.1} parent=0 // pred_region
    _
  $region33: #{forward.1} parent=0 // pred_fallthru
    _
  // Predicated region
  $region34: #{forward.1} parent=0 // pred_check
    _
  $region35: #{forward.1} parent=0 // pred_check_branch
    %381 = sbr.rel (0) target = $region37
  $region36: #{forward.1} parent=0 // pred_region
    _
  $region37: #{forward.1} parent=0 // pred_fallthru
    _

</llo_original>
